<compile_context>
chip_gen: v5e
topology: v5e:2x2
jax: 0.10.0
libtpu: 0.0.40
codegen_flags: <defaults>
</compile_context>

<pallas_src>
import jax
import jax.numpy as jnp
from jax.experimental import pallas as pl
from jax.experimental.pallas import tpu as pltpu

HEAD_LANES = 128  # lane-dense (zero-padded) width of the fused class+domain head


def dsn_kernel(xs_ref,      # [B, D]      f32   source images (flattened)
               xt_ref,      # [B, D]      f32   target images (flattened)
               wenc_ref,    # [D, 3H]     bf16  cols = [shared | priv_src | priv_tgt]
               benc_ref,    # [1, 3H]     f32
               whead_ref,   # [H, 128]    bf16  cols = [class | domain | zero-pad]
               bhead_ref,   # [1, 128]    f32
               wdec_ref,    # [H, TN]     bf16  decoder weight, current N-tile
               bdec_ref,    # [1, TN]     f32
               head_ref,    # [2B, 128]   f32   out: lane-dense packed heads
               dec_ref,     # [2B, TN]    bf16  out: decoder reconstruction tile
               xbuf_ref):   # [2B, D]     f32   VMEM scratch: stacked activations
    f32 = jnp.float32
    bf16 = jnp.bfloat16

    b = xs_ref.shape[0]
    two_b = 2 * b
    h = wdec_ref.shape[0]

    # Stage source/target into one stacked [2B, D] activation in VMEM
    # (rows 0:B = source, B:2B = target); activations arrive as a single f32
    # HBM read each and are cast to bf16 here for the MXU.
    xbuf_ref[0:b, :] = xs_ref[...]
    xbuf_ref[b:two_b, :] = xt_ref[...]
    x = xbuf_ref[...].astype(bf16)

    # Fused encoders: ONE MXU pass over the stacked input produces
    # [shared | @W_priv_src | @W_priv_tgt] for both domains.
    enc = jnp.dot(x, wenc_ref[...], preferred_element_type=f32) + benc_ref[...]

    shared = enc[:, 0:h]                                          # [2B, H]
    row = jax.lax.broadcasted_iota(jnp.int32, (two_b, h), 0)
    private = jnp.where(row < b,
                        enc[:, h:2 * h],          # source rows -> private_source_encoder
                        enc[:, 2 * h:3 * h])      # target rows -> private_target_encoder

    # Fused classification + domain heads (GRL is identity in the forward pass).
    # 128-lane padded -> unmasked lane-dense store.  Written every grid step with
    # identical (grid-invariant) values so the kernel stays safe under "parallel"
    # semantics on multi-TC chips.
    head_ref[...] = (jnp.dot(shared.astype(bf16), whead_ref[...],
                             preferred_element_type=f32) + bhead_ref[...])

    # concat_operation == elementwise add; shared decoder on the current N-tile only.
    dec_in = (shared + private).astype(bf16)
    dec = jnp.dot(dec_in, wdec_ref[...], preferred_element_type=f32) + bdec_ref[...]
    dec_ref[...] = dec.astype(dec_ref.dtype)


def fuse_params(params, compute_dtype=jnp.bfloat16):
    """One-time fusion of the per-layer weights into MXU-friendly packed operands."""
    (wse, bse, wps, bps, wpt, bpt, wc, bc, wd, bd, wdec, bdec) = params
    f32 = jnp.float32
    h_feat = wse.shape[1]
    n_cls, n_dom = wc.shape[1], wd.shape[1]
    assert n_cls + n_dom <= HEAD_LANES

    w_enc = jnp.concatenate([wse, wps, wpt], axis=1).astype(compute_dtype)   # [D, 3H]
    b_enc = jnp.concatenate([bse, bps, bpt], axis=1).astype(f32)             # [1, 3H]

    pad = HEAD_LANES - (n_cls + n_dom)
    w_head = jnp.concatenate([wc, wd, jnp.zeros((h_feat, pad), f32)],
                             axis=1).astype(compute_dtype)                   # [H, 128]
    b_head = jnp.concatenate([bc, bd, jnp.zeros((1, pad), f32)],
                             axis=1).astype(f32)                             # [1, 128]

    w_dec = wdec.astype(compute_dtype)                                       # [H, D]
    b_dec = bdec.astype(f32)                                                 # [1, D]
    return (w_enc, b_enc, w_head, b_head, w_dec, b_dec)


def _pick_dec_tile(d):
    """Largest lane-aligned decoder N-tile dividing D that still yields >=2 tiles
    (so the 'parallel' axis has work to split across v7x's two TensorCores)."""
    for tn in (2048, 1024, 512, 256, 128):
        if d % tn == 0 and d // tn >= 2:
            return tn
    return d


def dsn_forward(source_images, target_images, fused_params, n_cls, n_dom):
    """source/target images: [B, C, H, W] float32 (NCHW)."""
    (w_enc, b_enc, w_head, b_head, w_dec, b_dec) = fused_params
    B = source_images.shape[0]
    D = source_images.shape[1] * source_images.shape[2] * source_images.shape[3]
    h_feat = w_dec.shape[0]
    f32 = jnp.float32
    bf16 = jnp.bfloat16

    # Free contiguous reshape; activations stay f32 in HBM and are read exactly once
    # by the kernel (no wrapper-side cast/concat round trips).
    xs = source_images.reshape(B, D)
    xt = target_images.reshape(B, D)

    tn = _pick_dec_tile(D)
    nt = D // tn

    flops = 2 * (2 * B) * (nt * (D * w_enc.shape[1] + h_feat * HEAD_LANES)
                           + h_feat * D)
    bytes_in = sum(int(a.size) * a.dtype.itemsize
                   for a in (xs, xt, w_enc, b_enc, w_head, b_head, w_dec, b_dec))
    bytes_out = 2 * B * HEAD_LANES * 4 + 2 * B * D * 2
    cost = pl.CostEstimate(flops=flops, transcendentals=0,
                           bytes_accessed=bytes_in + bytes_out)

    grid_spec = pltpu.PrefetchScalarGridSpec(
        num_scalar_prefetch=0,
        grid=(nt,),
        in_specs=[
            pl.BlockSpec((B, D), lambda j: (0, 0)),                # xs  (resident)
            pl.BlockSpec((B, D), lambda j: (0, 0)),                # xt  (resident)
            pl.BlockSpec((D, w_enc.shape[1]), lambda j: (0, 0)),   # w_enc (resident)
            pl.BlockSpec((1, b_enc.shape[1]), lambda j: (0, 0)),   # b_enc
            pl.BlockSpec((h_feat, HEAD_LANES), lambda j: (0, 0)),  # w_head
            pl.BlockSpec((1, HEAD_LANES), lambda j: (0, 0)),       # b_head
            pl.BlockSpec((h_feat, tn), lambda j: (0, j)),          # w_dec N-tile
            pl.BlockSpec((1, tn), lambda j: (0, j)),               # b_dec N-tile
        ],
        out_specs=(
            pl.BlockSpec((2 * B, HEAD_LANES), lambda j: (0, 0)),   # packed heads
            pl.BlockSpec((2 * B, tn), lambda j: (0, j)),           # decoder N-tile
        ),
        scratch_shapes=[pltpu.VMEM((2 * B, D), f32)],              # stacked activations
    )

    head_out, dec_out = pl.pallas_call(
        dsn_kernel,
        out_shape=(jax.ShapeDtypeStruct((2 * B, HEAD_LANES), f32),
                   jax.ShapeDtypeStruct((2 * B, D), bf16)),
        grid_spec=grid_spec,
        compiler_params=pltpu.CompilerParams(
            dimension_semantics=("parallel",),        # v7x: split dec tiles across TCs
            vmem_limit_bytes=64 * 1024 * 1024),       # v5e scoped default is only 16 MiB
        cost_estimate=cost,
    )(xs, xt, w_enc, b_enc, w_head, b_head, w_dec, b_dec)

    logits_s = head_out[0:B, 0:n_cls]
    logits_t = head_out[B:2 * B, 0:n_cls]
    logits_d = head_out[:, n_cls:n_cls + n_dom]
    dec_s = dec_out[0:B]
    dec_t = dec_out[B:2 * B]
    return logits_s, logits_t, logits_d, dec_s, dec_t


def make_params(key, d_in, h_feat, n_cls, n_dom):
    ks = jax.random.split(key, 12)
    f32 = jnp.float32

    def lin(kw, kb, fan_in, fan_out):
        scale = 1.0 / jnp.sqrt(jnp.float32(fan_in))
        w = jax.random.uniform(kw, (fan_in, fan_out), f32, -scale, scale)
        b = jax.random.uniform(kb, (1, fan_out), f32, -scale, scale)
        return w, b

    wse, bse = lin(ks[0], ks[1], d_in, h_feat)      # shared encoder
    wps, bps = lin(ks[2], ks[3], d_in, h_feat)      # private source encoder
    wpt, bpt = lin(ks[4], ks[5], d_in, h_feat)      # private target encoder
    wc,  bc = lin(ks[6], ks[7], h_feat, n_cls)      # classification head
    wd,  bd = lin(ks[8], ks[9], h_feat, n_dom)      # domain classification
    wdec, bdec = lin(ks[10], ks[11], h_feat, d_in)  # shared decoder
    return (wse, bse, wps, bps, wpt, bpt, wc, bc, wd, bd, wdec, bdec)


def dsn_reference(source_images, target_images, params, compute_dtype=jnp.bfloat16):
    """Pure-JAX reference applying the same bf16 operand rounding (f32 accumulation)."""
    (wse, bse, wps, bps, wpt, bpt, wc, bc, wd, bd, wdec, bdec) = params
    f32 = jnp.float32

    def q(a):  # mimic the kernel's bf16 matmul-operand cast; accumulation stays f32
        return a.astype(compute_dtype).astype(f32)

    B = source_images.shape[0]
    xs = q(source_images.reshape(B, -1))
    xt = q(target_images.reshape(B, -1))
    shared_s = xs @ q(wse) + bse
    shared_t = xt @ q(wse) + bse
    private_s = xs @ q(wps) + bps
    private_t = xt @ q(wpt) + bpt
    logits_s = q(shared_s) @ q(wc) + bc
    logits_t = q(shared_t) @ q(wc) + bc
    shared_feat = jnp.concatenate([shared_s, shared_t], axis=0)
    logits_d = q(shared_feat) @ q(wd) + bd            # GRL == identity in forward
    dec_s = q(shared_s + private_s) @ q(wdec) + bdec
    dec_t = q(shared_t + private_t) @ q(wdec) + bdec
    return logits_s, logits_t, logits_d, dec_s, dec_t


if __name__ == "__main__":
    # Small shapes consistent with the module: NCHW images.
    B, C, H, W = 2, 4, 16, 16
    D_IN = C * H * W            # 1024
    H_FEAT = 32
    N_CLS = 8
    N_DOM = 2

    key = jax.random.PRNGKey(0)
    k_src, k_tgt, k_par = jax.random.split(key, 3)
    source_images = jax.random.normal(k_src, (B, C, H, W), jnp.float32)
    target_images = jax.random.normal(k_tgt, (B, C, H, W), jnp.float32)
    params = make_params(k_par, D_IN, H_FEAT, N_CLS, N_DOM)
    fused = fuse_params(params)

    outs = dsn_forward(source_images, target_images, fused, N_CLS, N_DOM)
    outs = jax.block_until_ready(outs)

    refs = dsn_reference(source_images, target_images, params)
    names = ("logits_s", "logits_t", "logits_d", "decode_s", "decode_t")
    exp_dtypes = (jnp.float32, jnp.float32, jnp.float32, jnp.bfloat16, jnp.bfloat16)
    for name, o, r, dt in zip(names, outs, refs, exp_dtypes):
        assert o.shape == r.shape, f"shape mismatch: {name}"
        assert o.dtype == dt, f"dtype mismatch: {name}"
        tol = 2e-2 if dt == jnp.float32 else 3e-2   # dec outputs carry bf16 output rounding
        assert jnp.allclose(o.astype(jnp.float32), r, atol=tol, rtol=tol), \
            f"mismatch vs reference: {name}"

    print("KERNEL_OK")
</pallas_src>

<mosaic_0001>
module attributes {stable_mosaic.version = 11 : i64} {
  func.func @dsn_kernel(%arg0: i32, %arg1: memref<2x1024xf32, #tpu.memory_space<vmem>>, %arg2: memref<2x1024xf32, #tpu.memory_space<vmem>>, %arg3: memref<1024x96xbf16, #tpu.memory_space<vmem>>, %arg4: memref<1x96xf32, #tpu.memory_space<vmem>>, %arg5: memref<32x128xbf16, #tpu.memory_space<vmem>>, %arg6: memref<1x128xf32, #tpu.memory_space<vmem>>, %arg7: memref<32x512xbf16, #tpu.memory_space<vmem>>, %arg8: memref<1x512xf32, #tpu.memory_space<vmem>>, %arg9: memref<4x128xf32, #tpu.memory_space<vmem>>, %arg10: memref<4x512xbf16, #tpu.memory_space<vmem>>, %arg11: memref<4x1024xf32, #tpu.memory_space<vmem>>) attributes {dimension_semantics = [#tpu.dimension_semantics<parallel>], iteration_bounds = array<i64: 2>, scalar_prefetch = 0 : i64, scratch_operands = 1 : i64, tpu.core_type = #tpu.core_type<tc>, window_params = [{pipeline_mode = #tpu.pipeline_mode<synchronous>, transform_indices = @transform_0, window_bounds = array<i64: 2, 1024>}, {pipeline_mode = #tpu.pipeline_mode<synchronous>, transform_indices = @transform_1, window_bounds = array<i64: 2, 1024>}, {pipeline_mode = #tpu.pipeline_mode<synchronous>, transform_indices = @transform_2, window_bounds = array<i64: 1024, 96>}, {pipeline_mode = #tpu.pipeline_mode<synchronous>, transform_indices = @transform_3, window_bounds = array<i64: 1, 96>}, {pipeline_mode = #tpu.pipeline_mode<synchronous>, transform_indices = @transform_4, window_bounds = array<i64: 32, 128>}, {pipeline_mode = #tpu.pipeline_mode<synchronous>, transform_indices = @transform_5, window_bounds = array<i64: 1, 128>}, {transform_indices = @transform_6, window_bounds = array<i64: 32, 512>}, {transform_indices = @transform_7, window_bounds = array<i64: 1, 512>}, {pipeline_mode = #tpu.pipeline_mode<synchronous>, transform_indices = @transform_8, window_bounds = array<i64: 4, 128>}, {transform_indices = @transform_9, window_bounds = array<i64: 4, 512>}]} {
    %c0 = arith.constant 0 : index
    %c0_0 = arith.constant 0 : index
    %0 = vector.load %arg1[%c0, %c0_0] : memref<2x1024xf32, #tpu.memory_space<vmem>>, vector<2x1024xf32>
    %c0_1 = arith.constant 0 : index
    %c0_2 = arith.constant 0 : index
    %1 = vector.load %arg11[%c0_1, %c0_2] : memref<4x1024xf32, #tpu.memory_space<vmem>>, vector<2x1024xf32>
    tpu.vector_store %arg11[%c0_1, %c0_2], %0 {strides = array<i32>} : memref<4x1024xf32, #tpu.memory_space<vmem>>, vector<2x1024xf32>,
    %c0_3 = arith.constant 0 : index
    %c0_4 = arith.constant 0 : index
    %2 = vector.load %arg2[%c0_3, %c0_4] : memref<2x1024xf32, #tpu.memory_space<vmem>>, vector<2x1024xf32>
    %c2 = arith.constant 2 : index
    %c0_5 = arith.constant 0 : index
    %3 = vector.load %arg11[%c2, %c0_5] : memref<4x1024xf32, #tpu.memory_space<vmem>>, vector<2x1024xf32>
    tpu.vector_store %arg11[%c2, %c0_5], %2 {strides = array<i32>} : memref<4x1024xf32, #tpu.memory_space<vmem>>, vector<2x1024xf32>,
    %c0_6 = arith.constant 0 : index
    %c0_7 = arith.constant 0 : index
    %4 = vector.load %arg11[%c0_6, %c0_7] : memref<4x1024xf32, #tpu.memory_space<vmem>>, vector<4x1024xf32>
    %5 = arith.truncf %4 : vector<4x1024xf32> to vector<4x1024xbf16>
    %c0_8 = arith.constant 0 : index
    %c0_9 = arith.constant 0 : index
    %6 = vector.load %arg3[%c0_8, %c0_9] : memref<1024x96xbf16, #tpu.memory_space<vmem>>, vector<1024x96xbf16>
    %cst = arith.constant dense<0.000000e+00> : vector<4x96xf32>
    %7 = tpu.matmul %5, %6, %cst {dimension_numbers = #tpu.dot_dimension_numbers<[1], [0], [0], [1], [0, 0, 1, 1], [], []>} : vector<4x1024xbf16>, vector<1024x96xbf16>, vector<4x96xf32> -> vector<4x96xf32>
    %c0_10 = arith.constant 0 : index
    %c0_11 = arith.constant 0 : index
    %8 = vector.load %arg4[%c0_10, %c0_11] : memref<1x96xf32, #tpu.memory_space<vmem>>, vector<1x96xf32>
    %9 = vector.broadcast %8 : vector<1x96xf32> to vector<4x96xf32>
    %10 = arith.addf %7, %9 : vector<4x96xf32>
    %11 = vector.extract_strided_slice %10 {offsets = [0, 0], sizes = [4, 32], strides = [1, 1]} : vector<4x96xf32> to vector<4x32xf32>
    %12 = tpu.iota {dimensions = array<i32: 0>} : vector<4x32xi32>
    %c2_i32 = arith.constant 2 : i32
    %13 = vector.broadcast %c2_i32 : i32 to vector<4x32xi32>
    %14 = arith.cmpi slt, %12, %13 : vector<4x32xi32>
    %15 = vector.extract_strided_slice %10 {offsets = [0, 32], sizes = [4, 32], strides = [1, 1]} : vector<4x96xf32> to vector<4x32xf32>
    %16 = vector.extract_strided_slice %10 {offsets = [0, 64], sizes = [4, 32], strides = [1, 1]} : vector<4x96xf32> to vector<4x32xf32>
    %17 = arith.select %14, %15, %16 : vector<4x32xi1>, vector<4x32xf32>
    %18 = arith.truncf %11 : vector<4x32xf32> to vector<4x32xbf16>
    %c0_12 = arith.constant 0 : index
    %c0_13 = arith.constant 0 : index
    %19 = vector.load %arg5[%c0_12, %c0_13] : memref<32x128xbf16, #tpu.memory_space<vmem>>, vector<32x128xbf16>
    %cst_14 = arith.constant dense<0.000000e+00> : vector<4x128xf32>
    %20 = tpu.matmul %18, %19, %cst_14 {dimension_numbers = #tpu.dot_dimension_numbers<[1], [0], [0], [1], [0, 0, 1, 1], [], []>} : vector<4x32xbf16>, vector<32x128xbf16>, vector<4x128xf32> -> vector<4x128xf32>
    %c0_15 = arith.constant 0 : index
    %c0_16 = arith.constant 0 : index
    %21 = vector.load %arg6[%c0_15, %c0_16] : memref<1x128xf32, #tpu.memory_space<vmem>>, vector<1x128xf32>
    %22 = vector.broadcast %21 : vector<1x128xf32> to vector<4x128xf32>
    %23 = arith.addf %20, %22 : vector<4x128xf32>
    %c0_17 = arith.constant 0 : index
    %c0_18 = arith.constant 0 : index
    %24 = vector.load %arg9[%c0_17, %c0_18] : memref<4x128xf32, #tpu.memory_space<vmem>>, vector<4x128xf32>
    tpu.vector_store %arg9[%c0_17, %c0_18], %23 {strides = array<i32>} : memref<4x128xf32, #tpu.memory_space<vmem>>, vector<4x128xf32>,
    %25 = arith.addf %11, %17 : vector<4x32xf32>
    %26 = arith.truncf %25 : vector<4x32xf32> to vector<4x32xbf16>
    %c0_19 = arith.constant 0 : index
    %c0_20 = arith.constant 0 : index
    %27 = vector.load %arg7[%c0_19, %c0_20] : memref<32x512xbf16, #tpu.memory_space<vmem>>, vector<32x512xbf16>
    %cst_21 = arith.constant dense<0.000000e+00> : vector<4x512xf32>
    %28 = tpu.matmul %26, %27, %cst_21 {dimension_numbers = #tpu.dot_dimension_numbers<[1], [0], [0], [1], [0, 0, 1, 1], [], []>} : vector<4x32xbf16>, vector<32x512xbf16>, vector<4x512xf32> -> vector<4x512xf32>
    %c0_22 = arith.constant 0 : index
    %c0_23 = arith.constant 0 : index
    %29 = vector.load %arg8[%c0_22, %c0_23] : memref<1x512xf32, #tpu.memory_space<vmem>>, vector<1x512xf32>
    %30 = vector.broadcast %29 : vector<1x512xf32> to vector<4x512xf32>
    %31 = arith.addf %28, %30 : vector<4x512xf32>
    %32 = arith.truncf %31 : vector<4x512xf32> to vector<4x512xbf16>
    %c0_24 = arith.constant 0 : index
    %c0_25 = arith.constant 0 : index
    %33 = vector.load %arg10[%c0_24, %c0_25] : memref<4x512xbf16, #tpu.memory_space<vmem>>, vector<4x512xbf16>
    tpu.vector_store %arg10[%c0_24, %c0_25], %32 {strides = array<i32>} : memref<4x512xbf16, #tpu.memory_space<vmem>>, vector<4x512xbf16>,
    return
  }
  func.func @transform_0(%arg0: i32) -> (i32, i32) {
    %c0_i32 = arith.constant 0 : i32
    %c0_i32_0 = arith.constant 0 : i32
    %c0_i32_1 = arith.constant 0 : i32
    return %c0_i32, %c0_i32_0 : i32, i32
  }
  func.func @transform_1(%arg0: i32) -> (i32, i32) {
    %c0_i32 = arith.constant 0 : i32
    %c0_i32_0 = arith.constant 0 : i32
    %c0_i32_1 = arith.constant 0 : i32
    return %c0_i32, %c0_i32_0 : i32, i32
  }
  func.func @transform_2(%arg0: i32) -> (i32, i32) {
    %c0_i32 = arith.constant 0 : i32
    %c0_i32_0 = arith.constant 0 : i32
    %c0_i32_1 = arith.constant 0 : i32
    return %c0_i32, %c0_i32_0 : i32, i32
  }
  func.func @transform_3(%arg0: i32) -> (i32, i32) {
    %c0_i32 = arith.constant 0 : i32
    %c0_i32_0 = arith.constant 0 : i32
    %c0_i32_1 = arith.constant 0 : i32
    return %c0_i32, %c0_i32_0 : i32, i32
  }
  func.func @transform_4(%arg0: i32) -> (i32, i32) {
    %c0_i32 = arith.constant 0 : i32
    %c0_i32_0 = arith.constant 0 : i32
    %c0_i32_1 = arith.constant 0 : i32
    return %c0_i32, %c0_i32_0 : i32, i32
  }
  func.func @transform_5(%arg0: i32) -> (i32, i32) {
    %c0_i32 = arith.constant 0 : i32
    %c0_i32_0 = arith.constant 0 : i32
    %c0_i32_1 = arith.constant 0 : i32
    return %c0_i32, %c0_i32_0 : i32, i32
  }
  func.func @transform_6(%arg0: i32) -> (i32, i32) {
    %c0_i32 = arith.constant 0 : i32
    %c0_i32_0 = arith.constant 0 : i32
    return %c0_i32, %arg0 : i32, i32
  }
  func.func @transform_7(%arg0: i32) -> (i32, i32) {
    %c0_i32 = arith.constant 0 : i32
    %c0_i32_0 = arith.constant 0 : i32
    return %c0_i32, %arg0 : i32, i32
  }
  func.func @transform_8(%arg0: i32) -> (i32, i32) {
    %c0_i32 = arith.constant 0 : i32
    %c0_i32_0 = arith.constant 0 : i32
    %c0_i32_1 = arith.constant 0 : i32
    return %c0_i32, %c0_i32_0 : i32, i32
  }
  func.func @transform_9(%arg0: i32) -> (i32, i32) {
    %c0_i32 = arith.constant 0 : i32
    %c0_i32_0 = arith.constant 0 : i32
    return %c0_i32, %arg0 : i32, i32
  }
}

</mosaic_0001>

<llo_original>
// kernel: tpu_custom_call.1
$region0: #{tpu_custom_call.1}
  #allocation0 [shape = 'u32[]', space=smem, size = 0x4, offset = 0x4, fixed_abs, tag = 'smem constant byte address 0x4 - core index']
  #allocation1 [shape = 'u32[72,128]{1,0:T(1,128)}', space=vmem, size = 0x9000, scoped, tag = 'internal scratch']
  #allocation2 [shape = 'f32[4,1024]{1,0:T(4,128)}', space=vmem, size = 0x4000, scoped, tag = 'scratch operand']
  %s0 = inlined_call_operand.vmem [shape: f32[2,1024], index: 0, kind: input, shape index: {}]
  %s1 = inlined_call_operand.vmem [shape: f32[2,1024], index: 1, kind: input, shape index: {}]
  %s2 = inlined_call_operand.vmem [shape: bf16[1024,96], index: 2, kind: input, shape index: {}]
  %s3 = inlined_call_operand.vmem [shape: f32[1,96], index: 3, kind: input, shape index: {}]
  %s4 = inlined_call_operand.vmem [shape: bf16[32,128], index: 4, kind: input, shape index: {}]
  %s5 = inlined_call_operand.vmem [shape: f32[1,128], index: 5, kind: input, shape index: {}]
  %s6 = inlined_call_operand.vmem [shape: bf16[32,1024], index: 6, kind: input, shape index: {}]
  %s7 = inlined_call_operand.vmem [shape: f32[1,1024], index: 7, kind: input, shape index: {}]
  %s8 = inlined_call_operand.hbm [shape: f32[4,128], index: 8, kind: output, shape index: {0}]
  %s9 = inlined_call_operand.hbm [shape: bf16[4,1024], index: 9, kind: output, shape index: {1}]
  %10 = xla_tuple %s8, %s9
  %s11 = sld [smem:[#allocation0]]
  $region96: #{tpu_custom_call.1} parent=0
    _
  %s13 = ssub.s32 1, %s11
  %s14 = scalar_select 0, %s13, %s11
  $region1: #{tpu_custom_call.1} parent=0
    #allocation3 [shape = 'u8[65536]{0}', space=vmem, size = 0x10000, scoped, tag = 'input window, operand 6']
    #allocation4 [shape = 'u8[2048]{0}', space=vmem, size = 0x800, scoped, tag = 'output window, operand 0, single buffered']
    #allocation5 [shape = 's32[2]{0}', space=sflag, size = 0x8, scoped, tag = 'scoped memory for tpu_custom_call.1']
    #allocation6 [shape = 'u8[8192]{0}', space=vmem, size = 0x2000, scoped, tag = 'output window, operand 1']
    #allocation7 [shape = 's32[2]{0}', space=sflag, size = 0x8, scoped, tag = 'scoped memory for tpu_custom_call.1']
    %15 = vsyncpa [#allocation5], 0
    %16 = vsyncpa [#allocation7], 0
    %s17 = scalar_lea.sflag [#allocation7], 1
    %18 = vsyncpa %s17, 0
    loop: start=0, step=1, limit=4
    $region2: #{tpu_custom_call.1} parent=1 // loop_pre_header
      _
    $region3: #{tpu_custom_call.1} parent=1 // loop_header
      %s20 = sphi 0, %s24
      %p21 = scmp.ge.s32.totalorder %s20, 4
      %s28 = sphi 0, %s28
      %s30 = sphi 0, %s28
      %s31 = sphi 0, %s30
      %s45 = sphi 0, %s31
      %s49 = sphi 0, %s49
      %s51 = sphi 0, %s49
      %s52 = sphi 0, %s51
      %s66 = sphi 0, %s52
      %s70 = sphi 0, %s70
      %s72 = sphi 0, %s70
      %s73 = sphi 0, %s72
      %s87 = sphi 0, %s73
      %s91 = sphi 0, %s91
      %s93 = sphi 0, %s91
      %s94 = sphi 0, %s93
      %s108 = sphi 0, %s94
      %s112 = sphi 0, %s112
      %s114 = sphi 0, %s112
      %s115 = sphi 0, %s114
      %s129 = sphi 0, %s115
      %s133 = sphi 0, %s133
      %s135 = sphi 0, %s133
      %s136 = sphi 0, %s135
      %s150 = sphi 0, %s136
      %s156 = sphi 0, %s158
      %s159 = sphi 0, %s156
      %s160 = sphi 0, %s159
      %s176 = sphi 0, %s160
      %s182 = sphi 0, %s184
      %s185 = sphi 0, %s182
      %s186 = sphi 0, %s185
      %s202 = sphi 0, %s186
      %s206 = sphi 0, %s206
      %s208 = sphi 0, %s206
      %s209 = sphi 0, %s208
      %s223 = sphi 0, %s209
      %s229 = sphi 0, %s231
      %s232 = sphi 0, %s229
      %s233 = sphi 0, %s232
      %s249 = sphi 0, %s233
    $region4: #{tpu_custom_call.1} parent=1 // loop_header_branch
      %23 = sbr.rel (%p21) target = $region8
    $region5: #{tpu_custom_call.1} parent=1 // loop_body
      %s25 = ssub.s32 %s20, 1
      %s26 = ssub.s32 %s20, 2
      %s27 = sadd.s32 %s20, 1
      %s29 = sadd.s32 %s28, 1
      %p32 = scmp.eq.s32.totalorder %s20, 1
      %p33 = scmp.ne.s32.totalorder %s28, %s30
      %p34 = scmp.eq.s32.totalorder %s20, 0
      %p35 = por %p33, %p34
      %p36 = scmp.ne.s32.totalorder %s28, %s30
      %p37 = scmp.eq.s32.totalorder %s25, 1
      %p38 = por %p36, %p37
      %p39 = scmp.ne.s32.totalorder %s30, %s31
      %p40 = scmp.eq.s32.totalorder %s25, 0
      %p41 = por %p39, %p40
      %p42 = scmp.ne.s32.totalorder %s30, %s31
      %p43 = scmp.eq.s32.totalorder %s26, 1
      %p44 = por %p42, %p43
      %p46 = scmp.ne.s32.totalorder %s31, %s45
      %p47 = scmp.eq.s32.totalorder %s26, 0
      %p48 = por %p46, %p47
      %s50 = sadd.s32 %s49, 1
      %p53 = scmp.eq.s32.totalorder %s20, 1
      %p54 = scmp.ne.s32.totalorder %s49, %s51
      %p55 = scmp.eq.s32.totalorder %s20, 0
      %p56 = por %p54, %p55
      %p57 = scmp.ne.s32.totalorder %s49, %s51
      %p58 = scmp.eq.s32.totalorder %s25, 1
      %p59 = por %p57, %p58
      %p60 = scmp.ne.s32.totalorder %s51, %s52
      %p61 = scmp.eq.s32.totalorder %s25, 0
      %p62 = por %p60, %p61
      %p63 = scmp.ne.s32.totalorder %s51, %s52
      %p64 = scmp.eq.s32.totalorder %s26, 1
      %p65 = por %p63, %p64
      %p67 = scmp.ne.s32.totalorder %s52, %s66
      %p68 = scmp.eq.s32.totalorder %s26, 0
      %p69 = por %p67, %p68
      %s71 = sadd.s32 %s70, 1
      %p74 = scmp.eq.s32.totalorder %s20, 1
      %p75 = scmp.ne.s32.totalorder %s70, %s72
      %p76 = scmp.eq.s32.totalorder %s20, 0
      %p77 = por %p75, %p76
      %p78 = scmp.ne.s32.totalorder %s70, %s72
      %p79 = scmp.eq.s32.totalorder %s25, 1
      %p80 = por %p78, %p79
      %p81 = scmp.ne.s32.totalorder %s72, %s73
      %p82 = scmp.eq.s32.totalorder %s25, 0
      %p83 = por %p81, %p82
      %p84 = scmp.ne.s32.totalorder %s72, %s73
      %p85 = scmp.eq.s32.totalorder %s26, 1
      %p86 = por %p84, %p85
      %p88 = scmp.ne.s32.totalorder %s73, %s87
      %p89 = scmp.eq.s32.totalorder %s26, 0
      %p90 = por %p88, %p89
      %s92 = sadd.s32 %s91, 1
      %p95 = scmp.eq.s32.totalorder %s20, 1
      %p96 = scmp.ne.s32.totalorder %s91, %s93
      %p97 = scmp.eq.s32.totalorder %s20, 0
      %p98 = por %p96, %p97
      %p99 = scmp.ne.s32.totalorder %s91, %s93
      %p100 = scmp.eq.s32.totalorder %s25, 1
      %p101 = por %p99, %p100
      %p102 = scmp.ne.s32.totalorder %s93, %s94
      %p103 = scmp.eq.s32.totalorder %s25, 0
      %p104 = por %p102, %p103
      %p105 = scmp.ne.s32.totalorder %s93, %s94
      %p106 = scmp.eq.s32.totalorder %s26, 1
      %p107 = por %p105, %p106
      %p109 = scmp.ne.s32.totalorder %s94, %s108
      %p110 = scmp.eq.s32.totalorder %s26, 0
      %p111 = por %p109, %p110
      %s113 = sadd.s32 %s112, 1
      %p116 = scmp.eq.s32.totalorder %s20, 1
      %p117 = scmp.ne.s32.totalorder %s112, %s114
      %p118 = scmp.eq.s32.totalorder %s20, 0
      %p119 = por %p117, %p118
      %p120 = scmp.ne.s32.totalorder %s112, %s114
      %p121 = scmp.eq.s32.totalorder %s25, 1
      %p122 = por %p120, %p121
      %p123 = scmp.ne.s32.totalorder %s114, %s115
      %p124 = scmp.eq.s32.totalorder %s25, 0
      %p125 = por %p123, %p124
      %p126 = scmp.ne.s32.totalorder %s114, %s115
      %p127 = scmp.eq.s32.totalorder %s26, 1
      %p128 = por %p126, %p127
      %p130 = scmp.ne.s32.totalorder %s115, %s129
      %p131 = scmp.eq.s32.totalorder %s26, 0
      %p132 = por %p130, %p131
      %s134 = sadd.s32 %s133, 1
      %p137 = scmp.eq.s32.totalorder %s20, 1
      %p138 = scmp.ne.s32.totalorder %s133, %s135
      %p139 = scmp.eq.s32.totalorder %s20, 0
      %p140 = por %p138, %p139
      %p141 = scmp.ne.s32.totalorder %s133, %s135
      %p142 = scmp.eq.s32.totalorder %s25, 1
      %p143 = por %p141, %p142
      %p144 = scmp.ne.s32.totalorder %s135, %s136
      %p145 = scmp.eq.s32.totalorder %s25, 0
      %p146 = por %p144, %p145
      %p147 = scmp.ne.s32.totalorder %s135, %s136
      %p148 = scmp.eq.s32.totalorder %s26, 1
      %p149 = por %p147, %p148
      %p151 = scmp.ne.s32.totalorder %s136, %s150
      %p152 = scmp.eq.s32.totalorder %s26, 0
      %p153 = por %p151, %p152
      %s154 = ssub.s32 %s20, %s27
      %p155 = scmp.eq.s32.totalorder %s154, 0
      %s157 = sadd.s32 %s156, 1
      %s158 = scalar_select %p155, %s156, %s157
      %p161 = pneg %p155
      %p162 = scmp.eq.s32.totalorder %s20, 1
      %p163 = por %p161, %p162
      %p164 = scmp.ne.s32.totalorder %s156, %s159
      %p165 = scmp.eq.s32.totalorder %s20, 0
      %p166 = por %p164, %p165
      %p167 = scmp.ne.s32.totalorder %s156, %s159
      %p168 = scmp.eq.s32.totalorder %s25, 1
      %p169 = por %p167, %p168
      %p170 = scmp.ne.s32.totalorder %s159, %s160
      %p171 = scmp.eq.s32.totalorder %s25, 0
      %p172 = por %p170, %p171
      %p173 = scmp.ne.s32.totalorder %s159, %s160
      %p174 = scmp.eq.s32.totalorder %s26, 1
      %p175 = por %p173, %p174
      %p177 = scmp.ne.s32.totalorder %s160, %s176
      %p178 = scmp.eq.s32.totalorder %s26, 0
      %p179 = por %p177, %p178
      %s180 = ssub.s32 %s20, %s27
      %p181 = scmp.eq.s32.totalorder %s180, 0
      %s183 = sadd.s32 %s182, 1
      %s184 = scalar_select %p181, %s182, %s183
      %p187 = pneg %p181
      %p188 = scmp.eq.s32.totalorder %s20, 1
      %p189 = por %p187, %p188
      %p190 = scmp.ne.s32.totalorder %s182, %s185
      %p191 = scmp.eq.s32.totalorder %s20, 0
      %p192 = por %p190, %p191
      %p193 = scmp.ne.s32.totalorder %s182, %s185
      %p194 = scmp.eq.s32.totalorder %s25, 1
      %p195 = por %p193, %p194
      %p196 = scmp.ne.s32.totalorder %s185, %s186
      %p197 = scmp.eq.s32.totalorder %s25, 0
      %p198 = por %p196, %p197
      %p199 = scmp.ne.s32.totalorder %s185, %s186
      %p200 = scmp.eq.s32.totalorder %s26, 1
      %p201 = por %p199, %p200
      %p203 = scmp.ne.s32.totalorder %s186, %s202
      %p204 = scmp.eq.s32.totalorder %s26, 0
      %p205 = por %p203, %p204
      %s207 = sadd.s32 %s206, 1
      %p210 = scmp.eq.s32.totalorder %s20, 1
      %p211 = scmp.ne.s32.totalorder %s206, %s208
      %p212 = scmp.eq.s32.totalorder %s20, 0
      %p213 = por %p211, %p212
      %p214 = scmp.ne.s32.totalorder %s206, %s208
      %p215 = scmp.eq.s32.totalorder %s25, 1
      %p216 = por %p214, %p215
      %p217 = scmp.ne.s32.totalorder %s208, %s209
      %p218 = scmp.eq.s32.totalorder %s25, 0
      %p219 = por %p217, %p218
      %p220 = scmp.ne.s32.totalorder %s208, %s209
      %p221 = scmp.eq.s32.totalorder %s26, 1
      %p222 = por %p220, %p221
      %p224 = scmp.ne.s32.totalorder %s209, %s223
      %p225 = scmp.eq.s32.totalorder %s26, 0
      %p226 = por %p224, %p225
      %s227 = ssub.s32 %s20, %s27
      %p228 = scmp.eq.s32.totalorder %s227, 0
      %s230 = sadd.s32 %s229, 1
      %s231 = scalar_select %p228, %s229, %s230
      %p234 = pneg %p228
      %p235 = scmp.eq.s32.totalorder %s20, 1
      %p236 = por %p234, %p235
      %p237 = scmp.ne.s32.totalorder %s229, %s232
      %p238 = scmp.eq.s32.totalorder %s20, 0
      %p239 = por %p237, %p238
      %p240 = scmp.ne.s32.totalorder %s229, %s232
      %p241 = scmp.eq.s32.totalorder %s25, 1
      %p242 = por %p240, %p241
      %p243 = scmp.ne.s32.totalorder %s232, %s233
      %p244 = scmp.eq.s32.totalorder %s25, 0
      %p245 = por %p243, %p244
      %p246 = scmp.ne.s32.totalorder %s232, %s233
      %p247 = scmp.eq.s32.totalorder %s26, 1
      %p248 = por %p246, %p247
      %p250 = scmp.ne.s32.totalorder %s233, %s249
      %p251 = scmp.eq.s32.totalorder %s26, 0
      %p252 = por %p250, %p251
      %p253 = scmp.le.s32.totalorder 1, %s20
      %p254 = scmp.lt.s32.totalorder %s20, 3
      %p255 = pnand %p253, %p254
      %p256 = pneg %p255
      // Predicated region
      $region9: #{tpu_custom_call.1} parent=5 // pred_check
        _
      $region10: #{tpu_custom_call.1} parent=5 // pred_check_branch
        %258 = sbr.rel (%p255) target = $region12
      $region11: #{tpu_custom_call.1} parent=5 // pred_region
        %s259 = ssub.s32 %s20, 1
        // Predicated region
        $region13: #{tpu_custom_call.1} parent=11 // pred_check
          %p260 = pneg %p41
        $region14: #{tpu_custom_call.1} parent=11 // pred_check_branch
          %262 = sbr.rel (%p260) target = $region16
        $region15: #{tpu_custom_call.1} parent=11 // pred_region
          _
        $region16: #{tpu_custom_call.1} parent=11 // pred_fallthru
          _
        // Predicated region
        $region17: #{tpu_custom_call.1} parent=11 // pred_check
          %p263 = pneg %p62
        $region18: #{tpu_custom_call.1} parent=11 // pred_check_branch
          %265 = sbr.rel (%p263) target = $region20
        $region19: #{tpu_custom_call.1} parent=11 // pred_region
          _
        $region20: #{tpu_custom_call.1} parent=11 // pred_fallthru
          _
        // Predicated region
        $region21: #{tpu_custom_call.1} parent=11 // pred_check
          %p266 = pneg %p83
        $region22: #{tpu_custom_call.1} parent=11 // pred_check_branch
          %268 = sbr.rel (%p266) target = $region24
        $region23: #{tpu_custom_call.1} parent=11 // pred_region
          _
        $region24: #{tpu_custom_call.1} parent=11 // pred_fallthru
          _
        // Predicated region
        $region25: #{tpu_custom_call.1} parent=11 // pred_check
          %p269 = pneg %p104
        $region26: #{tpu_custom_call.1} parent=11 // pred_check_branch
          %271 = sbr.rel (%p269) target = $region28
        $region27: #{tpu_custom_call.1} parent=11 // pred_region
          _
        $region28: #{tpu_custom_call.1} parent=11 // pred_fallthru
          _
        // Predicated region
        $region29: #{tpu_custom_call.1} parent=11 // pred_check
          %p272 = pneg %p125
        $region30: #{tpu_custom_call.1} parent=11 // pred_check_branch
          %274 = sbr.rel (%p272) target = $region32
        $region31: #{tpu_custom_call.1} parent=11 // pred_region
          _
        $region32: #{tpu_custom_call.1} parent=11 // pred_fallthru
          _
        // Predicated region
        $region33: #{tpu_custom_call.1} parent=11 // pred_check
          %p275 = pneg %p146
        $region34: #{tpu_custom_call.1} parent=11 // pred_check_branch
          %277 = sbr.rel (%p275) target = $region36
        $region35: #{tpu_custom_call.1} parent=11 // pred_region
          _
        $region36: #{tpu_custom_call.1} parent=11 // pred_fallthru
          _
      $region12: #{tpu_custom_call.1} parent=5 // pred_fallthru
        _
      %p278 = scmp.lt.s32.totalorder %s20, 2
      // Predicated region
      $region37: #{tpu_custom_call.1} parent=5 // pred_check
        %p279 = pneg %p278
      $region38: #{tpu_custom_call.1} parent=5 // pred_check_branch
        %281 = sbr.rel (%p279) target = $region40
      $region39: #{tpu_custom_call.1} parent=5 // pred_region
        // Predicated region
        $region41: #{tpu_custom_call.1} parent=39 // pred_check
          %p282 = pneg %p166
        $region42: #{tpu_custom_call.1} parent=39 // pred_check_branch
          %284 = sbr.rel (%p282) target = $region44
        $region43: #{tpu_custom_call.1} parent=39 // pred_region
          %s285 = sand.u32 %s156, 1
          %s286 = sand.u32 %s156, 1
          %s287 = smul.addr %s286, 64
          %s288 = scalar_lea.vmem [#allocation3], %s287
          %s289 = smul.u32 4, %s20
          %s290 = smul.addr %s289, 4
          %s291 = scalar_lea.vmem %s6, %s290
          // Predicated region
          $region45: #{tpu_custom_call.1} parent=43 // pred_check
            _
          $region46: #{tpu_custom_call.1} parent=43 // pred_check_branch
            %293 = sbr.rel (0) target = $region48
          $region47: #{tpu_custom_call.1} parent=43 // pred_region
            // Predicated region
            $region49: #{tpu_custom_call.1} parent=47 // pred_check
              _
            $region50: #{tpu_custom_call.1} parent=47 // pred_check_branch
              %295 = sbr.rel (0) target = $region52
            $region51: #{tpu_custom_call.1} parent=47 // pred_region
              loop: start=0, step=1, limit=1
              $region53: #{tpu_custom_call.1} parent=51 // loop_pre_header
                _
              $region54: #{tpu_custom_call.1} parent=51 // loop_header
                %s297 = sphi 0, %s301
                %p298 = scmp.ge.s32.totalorder %s297, 1
                %s302 = sphi %s291, %s291
                %s303 = sphi %s288, %s288
              $region55: #{tpu_custom_call.1} parent=51 // loop_header_branch
                %300 = sbr.rel (%p298) target = $region59
              $region56: #{tpu_custom_call.1} parent=51 // loop_body
                %v304 = vld [vmem:[%s302] sm:$0xff]
                %305 = vst [vmem:[%s303] sm:$0xff] %v304
                %v306 = vld [vmem:[%s302 + $0x8] sm:$0xff]
                %307 = vst [vmem:[%s303 + $0x8] sm:$0xff] %v306
                %v308 = vld [vmem:[%s302 + $0x20] sm:$0xff]
                %309 = vst [vmem:[%s303 + $0x10] sm:$0xff] %v308
                %v310 = vld [vmem:[%s302 + $0x28] sm:$0xff]
                %311 = vst [vmem:[%s303 + $0x18] sm:$0xff] %v310
                %v312 = vld [vmem:[%s302 + $0x40] sm:$0xff]
                %313 = vst [vmem:[%s303 + $0x20] sm:$0xff] %v312
                %v314 = vld [vmem:[%s302 + $0x48] sm:$0xff]
                %315 = vst [vmem:[%s303 + $0x28] sm:$0xff] %v314
                %v316 = vld [vmem:[%s302 + $0x60] sm:$0xff]
                %317 = vst [vmem:[%s303 + $0x30] sm:$0xff] %v316
                %v318 = vld [vmem:[%s302 + $0x68] sm:$0xff]
                %319 = vst [vmem:[%s303 + $0x38] sm:$0xff] %v318
              $region57: #{tpu_custom_call.1} parent=51 // loop_footer
                %s301 = sadd.s32 1, %s297
              $region58: #{tpu_custom_call.1} parent=51 // loop_footer_branch
                %296 = sbr.rel target = $region54
              $region59: #{tpu_custom_call.1} parent=51 // loop_exit
                _
            $region52: #{tpu_custom_call.1} parent=47 // pred_fallthru
              _
            // Predicated region
            $region60: #{tpu_custom_call.1} parent=47 // pred_check
              _
            $region61: #{tpu_custom_call.1} parent=47 // pred_check_branch
              %321 = sbr.rel target = $region63
            $region62: #{tpu_custom_call.1} parent=47 // pred_region
              _
            $region63: #{tpu_custom_call.1} parent=47 // pred_fallthru
              _
          $region48: #{tpu_custom_call.1} parent=43 // pred_fallthru
            _
          %322 = vnop
        $region44: #{tpu_custom_call.1} parent=39 // pred_fallthru
          _
        // Predicated region
        $region64: #{tpu_custom_call.1} parent=39 // pred_check
          %p323 = pneg %p192
        $region65: #{tpu_custom_call.1} parent=39 // pred_check_branch
          %325 = sbr.rel (%p323) target = $region67
        $region66: #{tpu_custom_call.1} parent=39 // pred_region
          %s326 = smul.u32 4, %s20
          %p327 = scmp.lt.s32.totalorder %s326, 7
          %s328 = scalar_select %p327, %s326, 7
          %s329 = scalar_lea.vmem %s7, %s328
          %s330 = smul.u32 4, %s20
        $region67: #{tpu_custom_call.1} parent=39 // pred_fallthru
          _
      $region40: #{tpu_custom_call.1} parent=5 // pred_fallthru
        _
      %p331 = scmp.le.s32.totalorder 1, %s20
      %p332 = scmp.lt.s32.totalorder %s20, 3
      %p333 = pnand %p331, %p332
      %p334 = pneg %p333
      // Predicated region
      $region68: #{tpu_custom_call.1} parent=5 // pred_check
        _
      $region69: #{tpu_custom_call.1} parent=5 // pred_check_branch
        %336 = sbr.rel (%p333) target = $region71
      $region70: #{tpu_custom_call.1} parent=5 // pred_region
        %s337 = ssub.s32 %s20, 1
        %s338 = sand.u32 %s159, 1
        %s339 = sand.u32 %s159, 1
        %s340 = smul.addr %s339, 64
        %s341 = scalar_lea.vmem [#allocation3], %s340
        // Predicated region
        $region72: #{tpu_custom_call.1} parent=70 // pred_check
          %p342 = pneg %p172
        $region73: #{tpu_custom_call.1} parent=70 // pred_check_branch
          %344 = sbr.rel (%p342) target = $region75
        $region74: #{tpu_custom_call.1} parent=70 // pred_region
          _
        $region75: #{tpu_custom_call.1} parent=70 // pred_fallthru
          _
        %p345 = pneg %p41
        %p346 = pneg %p38
        %p347 = pneg %p62
        %p348 = pneg %p59
        %p349 = pneg %p83
        %p350 = pneg %p80
        %p351 = pneg %p104
        %p352 = pneg %p101
        %p353 = pneg %p125
        %p354 = pneg %p122
        %p355 = pneg %p146
        %p356 = pneg %p143
        %s357 = sand.u32 %s159, 1
        %s358 = sand.u32 %s159, 1
        %s359 = smul.addr %s358, 64
        %s360 = scalar_lea.vmem [#allocation3], %s359
        %p361 = pneg %p172
        %p362 = pneg %p169
        %s363 = smul.u32 4, %s25
        %p364 = scmp.lt.s32.totalorder %s363, 7
        %s365 = scalar_select %p364, %s363, 7
        %s366 = scalar_lea.vmem %s7, %s365
        %p367 = pneg %p198
        %p368 = pneg %p195
        %p369 = pneg %p219
        %p370 = pneg %p216
        %p371 = pneg %p245
        %p372 = pneg %p242
        %s373 = sand.u32 %s232, 1
        %s374 = scalar_lea.sflag [#allocation7], %s373
        %s375 = sand.u32 %s232, 1
        %s376 = smul.addr %s375, 8
        %s377 = scalar_lea.vmem [#allocation6], %s376
        %s378 = smul.u32 4, %s25
        %s379 = smul.u32 4, %s25
        %p380 = scmp.lt.s32.totalorder %s379, 7
        %s381 = scalar_select %p380, %s379, 7
        %s382 = scalar_lea.vmem %s7, %s381
        %s383 = smul.u32 4, %s25
        %s384 = smul.u32 4, %s25
        %v386 = vld [vmem:[%s0] sm:$0xff]
        %v387 = vld [vmem:[%s0 + $0x8] sm:$0xff]
        %390 = vst [vmem:[#allocation1] ss:$2 sm:$0xff] %v386
        %s391 = scalar_lea.vmem [#allocation1], 16
        %392 = vst [vmem:[%s391] ss:$2 sm:$0xff] %v387
        %v393 = vld.sshfl [vmem:[#allocation1] sm:$0xff pattern:$0x75643120]
        %v394 = vld.sshfl [vmem:[#allocation1 + $0x8] sm:$0xff pattern:$0x75643120]
        %v395 = vld.sshfl [vmem:[#allocation1 + $0x10] sm:$0xff pattern:$0x75643120]
        %v396 = vld.sshfl [vmem:[#allocation1 + $0x18] sm:$0xff pattern:$0x75643120]
        %401 = vst [vmem:[#allocation2] sm:$0x33] %v393
        %402 = vst [vmem:[#allocation2 + $0x8] sm:$0x33] %v394
        %403 = vst [vmem:[#allocation2 + $0x10] sm:$0x33] %v395
        %404 = vst [vmem:[#allocation2 + $0x18] sm:$0x33] %v396
        %v405 = vld [vmem:[%s1] sm:$0xff]
        %v406 = vld [vmem:[%s1 + $0x8] sm:$0xff]
        %s409 = scalar_lea.vmem [#allocation1], 1
        %410 = vst [vmem:[%s409] ss:$2 sm:$0xff] %v405
        %s411 = scalar_lea.vmem [#allocation1], 17
        %412 = vst [vmem:[%s411] ss:$2 sm:$0xff] %v406
        %v413 = vld.sshfl [vmem:[#allocation1] sm:$0xff pattern:$0x75643120]
        %v414 = vld.sshfl [vmem:[#allocation1 + $0x8] sm:$0xff pattern:$0x75643120]
        %v415 = vld.sshfl [vmem:[#allocation1 + $0x10] sm:$0xff pattern:$0x75643120]
        %v416 = vld.sshfl [vmem:[#allocation1 + $0x18] sm:$0xff pattern:$0x75643120]
        %421 = vst [vmem:[#allocation2] sm:$0xcc] %v413
        %422 = vst [vmem:[#allocation2 + $0x8] sm:$0xcc] %v414
        %423 = vst [vmem:[#allocation2 + $0x10] sm:$0xcc] %v415
        %424 = vst [vmem:[#allocation2 + $0x18] sm:$0xcc] %v416
        %v425 = vld [vmem:[#allocation2] sm:$0xff]
        %v426 = vld [vmem:[#allocation2 + $0x8] sm:$0xff]
        %v427 = vld [vmem:[#allocation2 + $0x10] sm:$0xff]
        %v428 = vld [vmem:[#allocation2 + $0x18] sm:$0xff]
        %433 = vst [vmem:[#allocation1] ss:$2 sm:$0xff] %v425
        %s434 = scalar_lea.vmem [#allocation1], 16
        %435 = vst [vmem:[%s434] ss:$2 sm:$0xff] %v426
        %s436 = scalar_lea.vmem [#allocation1], 32
        %437 = vst [vmem:[%s436] ss:$2 sm:$0xff] %v427
        %s438 = scalar_lea.vmem [#allocation1], 48
        %439 = vst [vmem:[%s438] ss:$2 sm:$0xff] %v428
        %v440 = vld.sshfl [vmem:[#allocation1] sm:$0xff pattern:$0x75316420]
        %v441 = vld.sshfl [vmem:[#allocation1 + $0x8] sm:$0xff pattern:$0x75316420]
        %v442 = vld.sshfl [vmem:[#allocation1 + $0x10] sm:$0xff pattern:$0x75316420]
        %v443 = vld.sshfl [vmem:[#allocation1 + $0x18] sm:$0xff pattern:$0x75316420]
        %v444 = vld.sshfl [vmem:[#allocation1 + $0x20] sm:$0xff pattern:$0x75316420]
        %v445 = vld.sshfl [vmem:[#allocation1 + $0x28] sm:$0xff pattern:$0x75316420]
        %v446 = vld.sshfl [vmem:[#allocation1 + $0x30] sm:$0xff pattern:$0x75316420]
        %v447 = vld.sshfl [vmem:[#allocation1 + $0x38] sm:$0xff pattern:$0x75316420]
        %v456 = vpack.c.bf16 %v440, %v440
        %v457 = vpack.c.bf16 %v441, %v441
        %v458 = vpack.c.bf16 %v442, %v442
        %v459 = vpack.c.bf16 %v443, %v443
        %v460 = vpack.c.bf16 %v444, %v444
        %v461 = vpack.c.bf16 %v445, %v445
        %v462 = vpack.c.bf16 %v446, %v446
        %v463 = vpack.c.bf16 %v447, %v447
        %v464 = vld [vmem:[%s2] sm:$0xf]
        %v465 = vld [vmem:[%s2 + $0x4] sm:$0xf]
        %v466 = vld [vmem:[%s2 + $0x8] sm:$0xf]
        %v467 = vld [vmem:[%s2 + $0xc] sm:$0xf]
        %v468 = vld [vmem:[%s2 + $0x10] sm:$0xf]
        %v469 = vld [vmem:[%s2 + $0x14] sm:$0xf]
        %v470 = vld [vmem:[%s2 + $0x18] sm:$0xf]
        %v471 = vld [vmem:[%s2 + $0x1c] sm:$0xf]
        %v472 = vld [vmem:[%s2 + $0x20] sm:$0xf]
        %v473 = vld [vmem:[%s2 + $0x24] sm:$0xf]
        %v474 = vld [vmem:[%s2 + $0x28] sm:$0xf]
        %v475 = vld [vmem:[%s2 + $0x2c] sm:$0xf]
        %v476 = vld [vmem:[%s2 + $0x30] sm:$0xf]
        %v477 = vld [vmem:[%s2 + $0x34] sm:$0xf]
        %v478 = vld [vmem:[%s2 + $0x38] sm:$0xf]
        %v479 = vld [vmem:[%s2 + $0x3c] sm:$0xf]
        %v480 = vld [vmem:[%s2 + $0x40] sm:$0xf]
        %v481 = vld [vmem:[%s2 + $0x44] sm:$0xf]
        %v482 = vld [vmem:[%s2 + $0x48] sm:$0xf]
        %v483 = vld [vmem:[%s2 + $0x4c] sm:$0xf]
        %v484 = vld [vmem:[%s2 + $0x50] sm:$0xf]
        %v485 = vld [vmem:[%s2 + $0x54] sm:$0xf]
        %v486 = vld [vmem:[%s2 + $0x58] sm:$0xf]
        %v487 = vld [vmem:[%s2 + $0x5c] sm:$0xf]
        %v488 = vld [vmem:[%s2 + $0x60] sm:$0xf]
        %v489 = vld [vmem:[%s2 + $0x64] sm:$0xf]
        %v490 = vld [vmem:[%s2 + $0x68] sm:$0xf]
        %v491 = vld [vmem:[%s2 + $0x6c] sm:$0xf]
        %v492 = vld [vmem:[%s2 + $0x70] sm:$0xf]
        %v493 = vld [vmem:[%s2 + $0x74] sm:$0xf]
        %v494 = vld [vmem:[%s2 + $0x78] sm:$0xf]
        %v495 = vld [vmem:[%s2 + $0x7c] sm:$0xf]
        %v496 = vld [vmem:[%s2 + $0x80] sm:$0xf]
        %v497 = vld [vmem:[%s2 + $0x84] sm:$0xf]
        %v498 = vld [vmem:[%s2 + $0x88] sm:$0xf]
        %v499 = vld [vmem:[%s2 + $0x8c] sm:$0xf]
        %v500 = vld [vmem:[%s2 + $0x90] sm:$0xf]
        %v501 = vld [vmem:[%s2 + $0x94] sm:$0xf]
        %v502 = vld [vmem:[%s2 + $0x98] sm:$0xf]
        %v503 = vld [vmem:[%s2 + $0x9c] sm:$0xf]
        %v504 = vld [vmem:[%s2 + $0xa0] sm:$0xf]
        %v505 = vld [vmem:[%s2 + $0xa4] sm:$0xf]
        %v506 = vld [vmem:[%s2 + $0xa8] sm:$0xf]
        %v507 = vld [vmem:[%s2 + $0xac] sm:$0xf]
        %v508 = vld [vmem:[%s2 + $0xb0] sm:$0xf]
        %v509 = vld [vmem:[%s2 + $0xb4] sm:$0xf]
        %v510 = vld [vmem:[%s2 + $0xb8] sm:$0xf]
        %v511 = vld [vmem:[%s2 + $0xbc] sm:$0xf]
        %v512 = vld [vmem:[%s2 + $0xc0] sm:$0xf]
        %v513 = vld [vmem:[%s2 + $0xc4] sm:$0xf]
        %v514 = vld [vmem:[%s2 + $0xc8] sm:$0xf]
        %v515 = vld [vmem:[%s2 + $0xcc] sm:$0xf]
        %v516 = vld [vmem:[%s2 + $0xd0] sm:$0xf]
        %v517 = vld [vmem:[%s2 + $0xd4] sm:$0xf]
        %v518 = vld [vmem:[%s2 + $0xd8] sm:$0xf]
        %v519 = vld [vmem:[%s2 + $0xdc] sm:$0xf]
        %v520 = vld [vmem:[%s2 + $0xe0] sm:$0xf]
        %v521 = vld [vmem:[%s2 + $0xe4] sm:$0xf]
        %v522 = vld [vmem:[%s2 + $0xe8] sm:$0xf]
        %v523 = vld [vmem:[%s2 + $0xec] sm:$0xf]
        %v524 = vld [vmem:[%s2 + $0xf0] sm:$0xf]
        %v525 = vld [vmem:[%s2 + $0xf4] sm:$0xf]
        %v526 = vld [vmem:[%s2 + $0xf8] sm:$0xf]
        %v527 = vld [vmem:[%s2 + $0xfc] sm:$0xf]
        %v528 = vld [vmem:[%s2 + $0x100] sm:$0xf]
        %v529 = vld [vmem:[%s2 + $0x104] sm:$0xf]
        %v530 = vld [vmem:[%s2 + $0x108] sm:$0xf]
        %v531 = vld [vmem:[%s2 + $0x10c] sm:$0xf]
        %v532 = vld [vmem:[%s2 + $0x110] sm:$0xf]
        %v533 = vld [vmem:[%s2 + $0x114] sm:$0xf]
        %v534 = vld [vmem:[%s2 + $0x118] sm:$0xf]
        %v535 = vld [vmem:[%s2 + $0x11c] sm:$0xf]
        %v536 = vld [vmem:[%s2 + $0x120] sm:$0xf]
        %v537 = vld [vmem:[%s2 + $0x124] sm:$0xf]
        %v538 = vld [vmem:[%s2 + $0x128] sm:$0xf]
        %v539 = vld [vmem:[%s2 + $0x12c] sm:$0xf]
        %v540 = vld [vmem:[%s2 + $0x130] sm:$0xf]
        %v541 = vld [vmem:[%s2 + $0x134] sm:$0xf]
        %v542 = vld [vmem:[%s2 + $0x138] sm:$0xf]
        %v543 = vld [vmem:[%s2 + $0x13c] sm:$0xf]
        %v544 = vld [vmem:[%s2 + $0x140] sm:$0xf]
        %v545 = vld [vmem:[%s2 + $0x144] sm:$0xf]
        %v546 = vld [vmem:[%s2 + $0x148] sm:$0xf]
        %v547 = vld [vmem:[%s2 + $0x14c] sm:$0xf]
        %v548 = vld [vmem:[%s2 + $0x150] sm:$0xf]
        %v549 = vld [vmem:[%s2 + $0x154] sm:$0xf]
        %v550 = vld [vmem:[%s2 + $0x158] sm:$0xf]
        %v551 = vld [vmem:[%s2 + $0x15c] sm:$0xf]
        %v552 = vld [vmem:[%s2 + $0x160] sm:$0xf]
        %v553 = vld [vmem:[%s2 + $0x164] sm:$0xf]
        %v554 = vld [vmem:[%s2 + $0x168] sm:$0xf]
        %v555 = vld [vmem:[%s2 + $0x16c] sm:$0xf]
        %v556 = vld [vmem:[%s2 + $0x170] sm:$0xf]
        %v557 = vld [vmem:[%s2 + $0x174] sm:$0xf]
        %v558 = vld [vmem:[%s2 + $0x178] sm:$0xf]
        %v559 = vld [vmem:[%s2 + $0x17c] sm:$0xf]
        %v560 = vld [vmem:[%s2 + $0x180] sm:$0xf]
        %v561 = vld [vmem:[%s2 + $0x184] sm:$0xf]
        %v562 = vld [vmem:[%s2 + $0x188] sm:$0xf]
        %v563 = vld [vmem:[%s2 + $0x18c] sm:$0xf]
        %v564 = vld [vmem:[%s2 + $0x190] sm:$0xf]
        %v565 = vld [vmem:[%s2 + $0x194] sm:$0xf]
        %v566 = vld [vmem:[%s2 + $0x198] sm:$0xf]
        %v567 = vld [vmem:[%s2 + $0x19c] sm:$0xf]
        %v568 = vld [vmem:[%s2 + $0x1a0] sm:$0xf]
        %v569 = vld [vmem:[%s2 + $0x1a4] sm:$0xf]
        %v570 = vld [vmem:[%s2 + $0x1a8] sm:$0xf]
        %v571 = vld [vmem:[%s2 + $0x1ac] sm:$0xf]
        %v572 = vld [vmem:[%s2 + $0x1b0] sm:$0xf]
        %v573 = vld [vmem:[%s2 + $0x1b4] sm:$0xf]
        %v574 = vld [vmem:[%s2 + $0x1b8] sm:$0xf]
        %v575 = vld [vmem:[%s2 + $0x1bc] sm:$0xf]
        %v576 = vld [vmem:[%s2 + $0x1c0] sm:$0xf]
        %v577 = vld [vmem:[%s2 + $0x1c4] sm:$0xf]
        %v578 = vld [vmem:[%s2 + $0x1c8] sm:$0xf]
        %v579 = vld [vmem:[%s2 + $0x1cc] sm:$0xf]
        %v580 = vld [vmem:[%s2 + $0x1d0] sm:$0xf]
        %v581 = vld [vmem:[%s2 + $0x1d4] sm:$0xf]
        %v582 = vld [vmem:[%s2 + $0x1d8] sm:$0xf]
        %v583 = vld [vmem:[%s2 + $0x1dc] sm:$0xf]
        %v584 = vld [vmem:[%s2 + $0x1e0] sm:$0xf]
        %v585 = vld [vmem:[%s2 + $0x1e4] sm:$0xf]
        %v586 = vld [vmem:[%s2 + $0x1e8] sm:$0xf]
        %v587 = vld [vmem:[%s2 + $0x1ec] sm:$0xf]
        %v588 = vld [vmem:[%s2 + $0x1f0] sm:$0xf]
        %v589 = vld [vmem:[%s2 + $0x1f4] sm:$0xf]
        %v590 = vld [vmem:[%s2 + $0x1f8] sm:$0xf]
        %v591 = vld [vmem:[%s2 + $0x1fc] sm:$0xf]
        %v592 = vld [vmem:[%s3] sm:$0x1]
        %v594 = vperm.slane %v592, 0
        %v724 = vunpack.c.l.b16 %v464
        %v725 = vunpack.c.l.b16 %v465
        %v726 = vunpack.c.l.b16 %v466
        %v727 = vunpack.c.l.b16 %v467
        %v728 = vunpack.c.l.b16 %v468
        %v729 = vunpack.c.l.b16 %v469
        %v730 = vunpack.c.l.b16 %v470
        %v731 = vunpack.c.l.b16 %v471
        %v732 = vunpack.c.l.b16 %v472
        %v733 = vunpack.c.l.b16 %v473
        %v734 = vunpack.c.l.b16 %v474
        %v735 = vunpack.c.l.b16 %v475
        %v736 = vunpack.c.l.b16 %v476
        %v737 = vunpack.c.l.b16 %v477
        %v738 = vunpack.c.l.b16 %v478
        %v739 = vunpack.c.l.b16 %v479
        %v740 = vunpack.c.l.b16 %v480
        %v741 = vunpack.c.l.b16 %v481
        %v742 = vunpack.c.l.b16 %v482
        %v743 = vunpack.c.l.b16 %v483
        %v744 = vunpack.c.l.b16 %v484
        %v745 = vunpack.c.l.b16 %v485
        %v746 = vunpack.c.l.b16 %v486
        %v747 = vunpack.c.l.b16 %v487
        %v748 = vunpack.c.l.b16 %v488
        %v749 = vunpack.c.l.b16 %v489
        %v750 = vunpack.c.l.b16 %v490
        %v751 = vunpack.c.l.b16 %v491
        %v752 = vunpack.c.l.b16 %v492
        %v753 = vunpack.c.l.b16 %v493
        %v754 = vunpack.c.l.b16 %v494
        %v755 = vunpack.c.l.b16 %v495
        %v756 = vunpack.c.l.b16 %v496
        %v757 = vunpack.c.l.b16 %v497
        %v758 = vunpack.c.l.b16 %v498
        %v759 = vunpack.c.l.b16 %v499
        %v760 = vunpack.c.l.b16 %v500
        %v761 = vunpack.c.l.b16 %v501
        %v762 = vunpack.c.l.b16 %v502
        %v763 = vunpack.c.l.b16 %v503
        %v764 = vunpack.c.l.b16 %v504
        %v765 = vunpack.c.l.b16 %v505
        %v766 = vunpack.c.l.b16 %v506
        %v767 = vunpack.c.l.b16 %v507
        %v768 = vunpack.c.l.b16 %v508
        %v769 = vunpack.c.l.b16 %v509
        %v770 = vunpack.c.l.b16 %v510
        %v771 = vunpack.c.l.b16 %v511
        %v772 = vunpack.c.l.b16 %v512
        %v773 = vunpack.c.l.b16 %v513
        %v774 = vunpack.c.l.b16 %v514
        %v775 = vunpack.c.l.b16 %v515
        %v776 = vunpack.c.l.b16 %v516
        %v777 = vunpack.c.l.b16 %v517
        %v778 = vunpack.c.l.b16 %v518
        %v779 = vunpack.c.l.b16 %v519
        %v780 = vunpack.c.l.b16 %v520
        %v781 = vunpack.c.l.b16 %v521
        %v782 = vunpack.c.l.b16 %v522
        %v783 = vunpack.c.l.b16 %v523
        %v784 = vunpack.c.l.b16 %v524
        %v785 = vunpack.c.l.b16 %v525
        %v786 = vunpack.c.l.b16 %v526
        %v787 = vunpack.c.l.b16 %v527
        %v788 = vunpack.c.l.b16 %v528
        %v789 = vunpack.c.l.b16 %v529
        %v790 = vunpack.c.l.b16 %v530
        %v791 = vunpack.c.l.b16 %v531
        %v792 = vunpack.c.l.b16 %v532
        %v793 = vunpack.c.l.b16 %v533
        %v794 = vunpack.c.l.b16 %v534
        %v795 = vunpack.c.l.b16 %v535
        %v796 = vunpack.c.l.b16 %v536
        %v797 = vunpack.c.l.b16 %v537
        %v798 = vunpack.c.l.b16 %v538
        %v799 = vunpack.c.l.b16 %v539
        %v800 = vunpack.c.l.b16 %v540
        %v801 = vunpack.c.l.b16 %v541
        %v802 = vunpack.c.l.b16 %v542
        %v803 = vunpack.c.l.b16 %v543
        %v804 = vunpack.c.l.b16 %v544
        %v805 = vunpack.c.l.b16 %v545
        %v806 = vunpack.c.l.b16 %v546
        %v807 = vunpack.c.l.b16 %v547
        %v808 = vunpack.c.l.b16 %v548
        %v809 = vunpack.c.l.b16 %v549
        %v810 = vunpack.c.l.b16 %v550
        %v811 = vunpack.c.l.b16 %v551
        %v812 = vunpack.c.l.b16 %v552
        %v813 = vunpack.c.l.b16 %v553
        %v814 = vunpack.c.l.b16 %v554
        %v815 = vunpack.c.l.b16 %v555
        %v816 = vunpack.c.l.b16 %v556
        %v817 = vunpack.c.l.b16 %v557
        %v818 = vunpack.c.l.b16 %v558
        %v819 = vunpack.c.l.b16 %v559
        %v820 = vunpack.c.l.b16 %v560
        %v821 = vunpack.c.l.b16 %v561
        %v822 = vunpack.c.l.b16 %v562
        %v823 = vunpack.c.l.b16 %v563
        %v824 = vunpack.c.l.b16 %v564
        %v825 = vunpack.c.l.b16 %v565
        %v826 = vunpack.c.l.b16 %v566
        %v827 = vunpack.c.l.b16 %v567
        %v828 = vunpack.c.l.b16 %v568
        %v829 = vunpack.c.l.b16 %v569
        %v830 = vunpack.c.l.b16 %v570
        %v831 = vunpack.c.l.b16 %v571
        %v832 = vunpack.c.l.b16 %v572
        %v833 = vunpack.c.l.b16 %v573
        %v834 = vunpack.c.l.b16 %v574
        %v835 = vunpack.c.l.b16 %v575
        %v836 = vunpack.c.l.b16 %v576
        %v837 = vunpack.c.l.b16 %v577
        %v838 = vunpack.c.l.b16 %v578
        %v839 = vunpack.c.l.b16 %v579
        %v840 = vunpack.c.l.b16 %v580
        %v841 = vunpack.c.l.b16 %v581
        %v842 = vunpack.c.l.b16 %v582
        %v843 = vunpack.c.l.b16 %v583
        %v844 = vunpack.c.l.b16 %v584
        %v845 = vunpack.c.l.b16 %v585
        %v846 = vunpack.c.l.b16 %v586
        %v847 = vunpack.c.l.b16 %v587
        %v848 = vunpack.c.l.b16 %v588
        %v849 = vunpack.c.l.b16 %v589
        %v850 = vunpack.c.l.b16 %v590
        %v851 = vunpack.c.l.b16 %v591
        %v852 = vpack.c.b16 %v725, %v724
        %v853 = vpack.c.b16 %v727, %v726
        %v854 = vpack.c.b16 %v729, %v728
        %v855 = vpack.c.b16 %v731, %v730
        %v856 = vpack.c.b16 %v733, %v732
        %v857 = vpack.c.b16 %v735, %v734
        %v858 = vpack.c.b16 %v737, %v736
        %v859 = vpack.c.b16 %v739, %v738
        %v860 = vpack.c.b16 %v741, %v740
        %v861 = vpack.c.b16 %v743, %v742
        %v862 = vpack.c.b16 %v745, %v744
        %v863 = vpack.c.b16 %v747, %v746
        %v864 = vpack.c.b16 %v749, %v748
        %v865 = vpack.c.b16 %v751, %v750
        %v866 = vpack.c.b16 %v753, %v752
        %v867 = vpack.c.b16 %v755, %v754
        %v868 = vpack.c.b16 %v757, %v756
        %v869 = vpack.c.b16 %v759, %v758
        %v870 = vpack.c.b16 %v761, %v760
        %v871 = vpack.c.b16 %v763, %v762
        %v872 = vpack.c.b16 %v765, %v764
        %v873 = vpack.c.b16 %v767, %v766
        %v874 = vpack.c.b16 %v769, %v768
        %v875 = vpack.c.b16 %v771, %v770
        %v876 = vpack.c.b16 %v773, %v772
        %v877 = vpack.c.b16 %v775, %v774
        %v878 = vpack.c.b16 %v777, %v776
        %v879 = vpack.c.b16 %v779, %v778
        %v880 = vpack.c.b16 %v781, %v780
        %v881 = vpack.c.b16 %v783, %v782
        %v882 = vpack.c.b16 %v785, %v784
        %v883 = vpack.c.b16 %v787, %v786
        %v884 = vpack.c.b16 %v789, %v788
        %v885 = vpack.c.b16 %v791, %v790
        %v886 = vpack.c.b16 %v793, %v792
        %v887 = vpack.c.b16 %v795, %v794
        %v888 = vpack.c.b16 %v797, %v796
        %v889 = vpack.c.b16 %v799, %v798
        %v890 = vpack.c.b16 %v801, %v800
        %v891 = vpack.c.b16 %v803, %v802
        %v892 = vpack.c.b16 %v805, %v804
        %v893 = vpack.c.b16 %v807, %v806
        %v894 = vpack.c.b16 %v809, %v808
        %v895 = vpack.c.b16 %v811, %v810
        %v896 = vpack.c.b16 %v813, %v812
        %v897 = vpack.c.b16 %v815, %v814
        %v898 = vpack.c.b16 %v817, %v816
        %v899 = vpack.c.b16 %v819, %v818
        %v900 = vpack.c.b16 %v821, %v820
        %v901 = vpack.c.b16 %v823, %v822
        %v902 = vpack.c.b16 %v825, %v824
        %v903 = vpack.c.b16 %v827, %v826
        %v904 = vpack.c.b16 %v829, %v828
        %v905 = vpack.c.b16 %v831, %v830
        %v906 = vpack.c.b16 %v833, %v832
        %v907 = vpack.c.b16 %v835, %v834
        %v908 = vpack.c.b16 %v837, %v836
        %v909 = vpack.c.b16 %v839, %v838
        %v910 = vpack.c.b16 %v841, %v840
        %v911 = vpack.c.b16 %v843, %v842
        %v912 = vpack.c.b16 %v845, %v844
        %v913 = vpack.c.b16 %v847, %v846
        %v914 = vpack.c.b16 %v849, %v848
        %v915 = vpack.c.b16 %v851, %v850
        %980 = vmatpush.bf16.msra.mxu0 %v859
        %981 = vmatpush.bf16.msra.mxu0 %v858
        %982 = vmatpush.bf16.msra.mxu0 %v857
        %983 = vmatpush.bf16.msra.mxu0 %v856
        %984 = vmatpush.bf16.msra.mxu0 %v855
        %985 = vmatpush.bf16.msra.mxu0 %v854
        %986 = vmatpush.bf16.msra.mxu0 %v853
        %987 = vmatpush.bf16.msra.mxu0 %v852
        %988 = vmatmul.bf16.gmra.mxu0 %v456
        %v989 = vpop.f32.mrf.mxu0
        %v990 = vadd.f32 %v594, %v989
        %v991 = vpop.f32.mrf.mxu0
        %992 = vdwg.mxu0
        %993 = vmatpush.bf16.msra.mxu0 %v867
        %994 = vmatpush.bf16.msra.mxu0 %v866
        %995 = vmatpush.bf16.msra.mxu0 %v865
        %996 = vmatpush.bf16.msra.mxu0 %v864
        %997 = vmatpush.bf16.msra.mxu0 %v863
        %998 = vmatpush.bf16.msra.mxu0 %v862
        %999 = vmatpush.bf16.msra.mxu0 %v861
        %1000 = vmatpush.bf16.msra.mxu0 %v860
        %1001 = vmatmul.bf16.gmra.mxu0 %v457
        %v1002 = vpop.f32.mrf.mxu0
        %v1003 = vadd.f32 %v990, %v1002
        %v1004 = vpop.f32.mrf.mxu0
        %1005 = vdwg.mxu0
        %1006 = vmatpush.bf16.msra.mxu0 %v875
        %1007 = vmatpush.bf16.msra.mxu0 %v874
        %1008 = vmatpush.bf16.msra.mxu0 %v873
        %1009 = vmatpush.bf16.msra.mxu0 %v872
        %1010 = vmatpush.bf16.msra.mxu0 %v871
        %1011 = vmatpush.bf16.msra.mxu0 %v870
        %1012 = vmatpush.bf16.msra.mxu0 %v869
        %1013 = vmatpush.bf16.msra.mxu0 %v868
        %1014 = vmatmul.bf16.gmra.mxu0 %v458
        %v1015 = vpop.f32.mrf.mxu0
        %v1016 = vadd.f32 %v1003, %v1015
        %v1017 = vpop.f32.mrf.mxu0
        %1018 = vdwg.mxu0
        %1019 = vmatpush.bf16.msra.mxu0 %v883
        %1020 = vmatpush.bf16.msra.mxu0 %v882
        %1021 = vmatpush.bf16.msra.mxu0 %v881
        %1022 = vmatpush.bf16.msra.mxu0 %v880
        %1023 = vmatpush.bf16.msra.mxu0 %v879
        %1024 = vmatpush.bf16.msra.mxu0 %v878
        %1025 = vmatpush.bf16.msra.mxu0 %v877
        %1026 = vmatpush.bf16.msra.mxu0 %v876
        %1027 = vmatmul.bf16.gmra.mxu0 %v459
        %v1028 = vpop.f32.mrf.mxu0
        %v1029 = vadd.f32 %v1016, %v1028
        %v1030 = vpop.f32.mrf.mxu0
        %1031 = vdwg.mxu0
        %1032 = vmatpush.bf16.msra.mxu0 %v891
        %1033 = vmatpush.bf16.msra.mxu0 %v890
        %1034 = vmatpush.bf16.msra.mxu0 %v889
        %1035 = vmatpush.bf16.msra.mxu0 %v888
        %1036 = vmatpush.bf16.msra.mxu0 %v887
        %1037 = vmatpush.bf16.msra.mxu0 %v886
        %1038 = vmatpush.bf16.msra.mxu0 %v885
        %1039 = vmatpush.bf16.msra.mxu0 %v884
        %1040 = vmatmul.bf16.gmra.mxu0 %v460
        %v1041 = vpop.f32.mrf.mxu0
        %v1042 = vadd.f32 %v1029, %v1041
        %v1043 = vpop.f32.mrf.mxu0
        %1044 = vdwg.mxu0
        %1045 = vmatpush.bf16.msra.mxu0 %v899
        %1046 = vmatpush.bf16.msra.mxu0 %v898
        %1047 = vmatpush.bf16.msra.mxu0 %v897
        %1048 = vmatpush.bf16.msra.mxu0 %v896
        %1049 = vmatpush.bf16.msra.mxu0 %v895
        %1050 = vmatpush.bf16.msra.mxu0 %v894
        %1051 = vmatpush.bf16.msra.mxu0 %v893
        %1052 = vmatpush.bf16.msra.mxu0 %v892
        %1053 = vmatmul.bf16.gmra.mxu0 %v461
        %v1054 = vpop.f32.mrf.mxu0
        %v1055 = vadd.f32 %v1042, %v1054
        %v1056 = vpop.f32.mrf.mxu0
        %1057 = vdwg.mxu0
        %1058 = vmatpush.bf16.msra.mxu0 %v907
        %1059 = vmatpush.bf16.msra.mxu0 %v906
        %1060 = vmatpush.bf16.msra.mxu0 %v905
        %1061 = vmatpush.bf16.msra.mxu0 %v904
        %1062 = vmatpush.bf16.msra.mxu0 %v903
        %1063 = vmatpush.bf16.msra.mxu0 %v902
        %1064 = vmatpush.bf16.msra.mxu0 %v901
        %1065 = vmatpush.bf16.msra.mxu0 %v900
        %1066 = vmatmul.bf16.gmra.mxu0 %v462
        %v1067 = vpop.f32.mrf.mxu0
        %v1068 = vadd.f32 %v1055, %v1067
        %v1069 = vpop.f32.mrf.mxu0
        %1070 = vdwg.mxu0
        %1071 = vmatpush.bf16.msra.mxu0 %v915
        %1072 = vmatpush.bf16.msra.mxu0 %v914
        %1073 = vmatpush.bf16.msra.mxu0 %v913
        %1074 = vmatpush.bf16.msra.mxu0 %v912
        %1075 = vmatpush.bf16.msra.mxu0 %v911
        %1076 = vmatpush.bf16.msra.mxu0 %v910
        %1077 = vmatpush.bf16.msra.mxu0 %v909
        %1078 = vmatpush.bf16.msra.mxu0 %v908
        %1079 = vmatmul.bf16.gmra.mxu0 %v463
        %v1080 = vpop.f32.mrf.mxu0
        %v1081 = vadd.f32 %v1068, %v1080
        %v1082 = vpop.f32.mrf.mxu0
        %1083 = vdwg.mxu0
        %v1084 = vlaneseq
        %v1085 = vshrl.u32 %v1084, 7
        %vm1086 = vcmp.lt.s32.totalorder %v1085, 2
        %1088 = vrot.lane.b32.xlu0 %v1081, 96
        %v1089 = vpop.permute.xlu0 %1088
        %v1091 = vsel %vm1086, %v1081, %v1089
        %v1092 = vpack.c.bf16 %v1081, %v1081
        %v1093 = vld [vmem:[%s4] sm:$0xf]
        %v1094 = vld [vmem:[%s4 + $0x4] sm:$0xf]
        %v1095 = vld [vmem:[%s4 + $0x8] sm:$0xf]
        %v1096 = vld [vmem:[%s4 + $0xc] sm:$0xf]
        %v1097 = vld [vmem:[%s5] sm:$0x1]
        %v1099 = vperm.slane %v1097, 0
        %v1105 = vunpack.c.l.b16 %v1093
        %v1106 = vunpack.c.l.b16 %v1094
        %v1107 = vunpack.c.l.b16 %v1095
        %v1108 = vunpack.c.l.b16 %v1096
        %v1109 = vpack.c.b16 %v1106, %v1105
        %v1110 = vpack.c.b16 %v1108, %v1107
        %vm1113 = vcmask 261120
        %v1115 = vsel %vm1113, %v1092, 0
        %1117 = vmatpush.bf16.msra.mxu0 0
        %1118 = vmatpush.bf16.msra.mxu0 0
        %1119 = vmatpush.bf16.msra.mxu0 0
        %1120 = vmatpush.bf16.msra.mxu0 0
        %1121 = vmatpush.bf16.msra.mxu0 0
        %1122 = vmatpush.bf16.msra.mxu0 0
        %1123 = vmatpush.bf16.msra.mxu0 %v1110
        %1124 = vmatpush.bf16.msra.mxu0 %v1109
        %1125 = vmatmul.bf16.gmra.mxu0 %v1115
        %v1126 = vpop.f32.mrf.mxu0
        %v1127 = vadd.f32 %v1099, %v1126
        %v1128 = vpop.f32.mrf.mxu0
        %1129 = vdwg.mxu0
        %1130 = vst [vmem:[#allocation4] sm:$0xf] %v1127
        %1132 = vrot.lane.b32.xlu0 %v1091, 96
        %v1133 = vpop.permute.xlu0 %1132
        %v1135 = vadd.f32 %v1081, %v1133
        %v1136 = vpack.c.bf16 %v1135, %v1135
        %v1137 = vld [vmem:[%s341] sm:$0xff]
        %v1138 = vld [vmem:[%s341 + $0x8] sm:$0xff]
        %v1139 = vld [vmem:[%s341 + $0x10] sm:$0xff]
        %v1140 = vld [vmem:[%s341 + $0x18] sm:$0xff]
        %v1141 = vld [vmem:[%s341 + $0x20] sm:$0xff]
        %v1142 = vld [vmem:[%s341 + $0x28] sm:$0xff]
        %v1143 = vld [vmem:[%s341 + $0x30] sm:$0xff]
        %v1144 = vld [vmem:[%s341 + $0x38] sm:$0xff]
        %v1145 = vld [vmem:[%s382] sm:$0xf]
        %v1147 = vperm.slane %v1145, 0
        %v1148 = vperm.slane %v1145, 1
        %v1149 = vperm.slane %v1145, 2
        %v1150 = vperm.slane %v1145, 3
        %v1163 = vunpack.c.l.b16 %v1137
        %v1164 = vunpack.c.h.b16 %v1137
        %v1165 = vunpack.c.l.b16 %v1138
        %v1166 = vunpack.c.h.b16 %v1138
        %v1167 = vunpack.c.l.b16 %v1139
        %v1168 = vunpack.c.h.b16 %v1139
        %v1169 = vunpack.c.l.b16 %v1140
        %v1170 = vunpack.c.h.b16 %v1140
        %v1171 = vunpack.c.l.b16 %v1141
        %v1172 = vunpack.c.h.b16 %v1141
        %v1173 = vunpack.c.l.b16 %v1142
        %v1174 = vunpack.c.h.b16 %v1142
        %v1175 = vunpack.c.l.b16 %v1143
        %v1176 = vunpack.c.h.b16 %v1143
        %v1177 = vunpack.c.l.b16 %v1144
        %v1178 = vunpack.c.h.b16 %v1144
        %v1179 = vpack.c.b16 %v1167, %v1163
        %v1180 = vpack.c.b16 %v1168, %v1164
        %v1181 = vpack.c.b16 %v1169, %v1165
        %v1182 = vpack.c.b16 %v1170, %v1166
        %v1183 = vpack.c.b16 %v1175, %v1171
        %v1184 = vpack.c.b16 %v1176, %v1172
        %v1185 = vpack.c.b16 %v1177, %v1173
        %v1186 = vpack.c.b16 %v1178, %v1174
        %v1196 = vsel %vm1113, %v1136, 0
        %1198 = vmatpush.bf16.msra.mxu0 0
        %1199 = vmatpush.bf16.msra.mxu0 0
        %1200 = vmatpush.bf16.msra.mxu0 0
        %1201 = vmatpush.bf16.msra.mxu0 0
        %1202 = vmatpush.bf16.msra.mxu0 0
        %1203 = vmatpush.bf16.msra.mxu0 0
        %1204 = vmatpush.bf16.msra.mxu0 %v1183
        %1205 = vmatpush.bf16.msra.mxu0 %v1179
        %1206 = vmatmul.bf16.gmra.mxu0 %v1196
        %v1207 = vpop.f32.mrf.mxu0
        %v1208 = vadd.f32 %v1147, %v1207
        %v1209 = vpop.f32.mrf.mxu0
        %1210 = vdwg.mxu0
        %1211 = vmatpush.bf16.msra.mxu0 0
        %1212 = vmatpush.bf16.msra.mxu0 0
        %1213 = vmatpush.bf16.msra.mxu0 0
        %1214 = vmatpush.bf16.msra.mxu0 0
        %1215 = vmatpush.bf16.msra.mxu0 0
        %1216 = vmatpush.bf16.msra.mxu0 0
        %1217 = vmatpush.bf16.msra.mxu0 %v1184
        %1218 = vmatpush.bf16.msra.mxu0 %v1180
        %1219 = vmatmul.bf16.gmra.mxu0 %v1196
        %v1220 = vpop.f32.mrf.mxu0
        %v1221 = vadd.f32 %v1148, %v1220
        %v1222 = vpop.f32.mrf.mxu0
        %1223 = vdwg.mxu0
        %1224 = vmatpush.bf16.msra.mxu0 0
        %1225 = vmatpush.bf16.msra.mxu0 0
        %1226 = vmatpush.bf16.msra.mxu0 0
        %1227 = vmatpush.bf16.msra.mxu0 0
        %1228 = vmatpush.bf16.msra.mxu0 0
        %1229 = vmatpush.bf16.msra.mxu0 0
        %1230 = vmatpush.bf16.msra.mxu0 %v1185
        %1231 = vmatpush.bf16.msra.mxu0 %v1181
        %1232 = vmatmul.bf16.gmra.mxu0 %v1196
        %v1233 = vpop.f32.mrf.mxu0
        %v1234 = vadd.f32 %v1149, %v1233
        %v1235 = vpop.f32.mrf.mxu0
        %1236 = vdwg.mxu0
        %1237 = vmatpush.bf16.msra.mxu0 0
        %1238 = vmatpush.bf16.msra.mxu0 0
        %1239 = vmatpush.bf16.msra.mxu0 0
        %1240 = vmatpush.bf16.msra.mxu0 0
        %1241 = vmatpush.bf16.msra.mxu0 0
        %1242 = vmatpush.bf16.msra.mxu0 0
        %1243 = vmatpush.bf16.msra.mxu0 %v1186
        %1244 = vmatpush.bf16.msra.mxu0 %v1182
        %1245 = vmatmul.bf16.gmra.mxu0 %v1196
        %v1246 = vpop.f32.mrf.mxu0
        %v1247 = vadd.f32 %v1150, %v1246
        %v1248 = vpop.f32.mrf.mxu0
        %1249 = vdwg.mxu0
        %v1250 = vpack.c.bf16 %v1221, %v1208
        %v1251 = vpack.c.bf16 %v1247, %v1234
        %v1254 = vrot.slane %v1250, 2
        %v1255 = vrot.slane %v1251, 4
        %v1256 = vrot.slane %v1251, 6
        %vm1257 = vcmask 1041408
        %v1260 = vsel %vm1257, %v1250, %v1254
        %vm1261 = vcmask 1045508
        %v1264 = vsel %vm1261, %v1255, %v1256
        %vm1265 = vcmask 1043456
        %v1266 = vsel %vm1265, %v1260, %v1264
        %1268 = vst [vmem:[%s377] sm:$0xff] %v1266
        %s1269 = sand.u32 %s232, 1
        %s1270 = scalar_lea.sflag [#allocation7], %s1269
        %s1271 = sand.u32 %s232, 1
        %s1272 = smul.addr %s1271, 8
        %s1273 = scalar_lea.vmem [#allocation6], %s1272
        // Predicated region
        $region76: #{tpu_custom_call.1} parent=70 // pred_check
          %p1274 = pneg %p216
        $region77: #{tpu_custom_call.1} parent=70 // pred_check_branch
          %1276 = sbr.rel (%p1274) target = $region79
        $region78: #{tpu_custom_call.1} parent=70 // pred_region
          %1278 = vsyncadd [#allocation5], 0
          %s1280 = sshll.u32 [#allocation4], 4
          %s1281 = int_to_ptr.vmem [resolvable:$true] %s1280
          %s1282 = sshll.u32 %s8, 4
          %s1283 = int_to_ptr.hbm [resolvable:$true] %s1282
          %1285 = dma.vmem_to_hbm [thread:$0]  %s1281, 64, %s1283, [#allocation5]
        $region79: #{tpu_custom_call.1} parent=70 // pred_fallthru
          _
        // Predicated region
        $region80: #{tpu_custom_call.1} parent=70 // pred_check
          %p1286 = pneg %p242
        $region81: #{tpu_custom_call.1} parent=70 // pred_check_branch
          %1288 = sbr.rel (%p1286) target = $region83
        $region82: #{tpu_custom_call.1} parent=70 // pred_region
          %s1289 = smul.u32 4, %s25
          %1291 = vsyncadd %s1270, 0
          %s1292 = smul.addr %s1289, 2
          %s1293 = scalar_lea.hbm %s9, %s1292
          %s1295 = sshll.u32 %s1273, 4
          %s1296 = int_to_ptr.vmem [resolvable:$true] %s1295
          %s1297 = sshll.u32 %s1293, 4
          %s1298 = int_to_ptr.hbm [resolvable:$true] %s1297
          %1300 = dma.vmem_to_hbm [thread:$0]  %s1296, 128, %s1298, %s1270
        $region83: #{tpu_custom_call.1} parent=70 // pred_fallthru
          _
        // Predicated region
        $region84: #{tpu_custom_call.1} parent=70 // pred_check
          %p1301 = pneg %p216
        $region85: #{tpu_custom_call.1} parent=70 // pred_check_branch
          %1303 = sbr.rel (%p1301) target = $region87
        $region86: #{tpu_custom_call.1} parent=70 // pred_region
          %1305 = dma.done [#allocation5], 64
        $region87: #{tpu_custom_call.1} parent=70 // pred_fallthru
          _
      $region71: #{tpu_custom_call.1} parent=5 // pred_fallthru
        _
      %p1306 = scmp.le.s32.totalorder 2, %s20
      // Predicated region
      $region88: #{tpu_custom_call.1} parent=5 // pred_check
        %p1307 = pneg %p1306
      $region89: #{tpu_custom_call.1} parent=5 // pred_check_branch
        %1309 = sbr.rel (%p1307) target = $region91
      $region90: #{tpu_custom_call.1} parent=5 // pred_region
        %s1310 = ssub.s32 %s20, 2
        // Predicated region
        $region92: #{tpu_custom_call.1} parent=90 // pred_check
          %p1311 = pneg %p248
        $region93: #{tpu_custom_call.1} parent=90 // pred_check_branch
          %1313 = sbr.rel (%p1311) target = $region95
        $region94: #{tpu_custom_call.1} parent=90 // pred_region
          %s1314 = sand.u32 %s233, 1
          %s1315 = scalar_lea.sflag [#allocation7], %s1314
          %s1316 = sand.u32 %s233, 1
          %s1317 = smul.addr %s1316, 8
          %s1318 = scalar_lea.vmem [#allocation6], %s1317
          %1320 = dma.done %s1315, 128
        $region95: #{tpu_custom_call.1} parent=90 // pred_fallthru
          _
      $region91: #{tpu_custom_call.1} parent=5 // pred_fallthru
        _
    $region6: #{tpu_custom_call.1} parent=1 // loop_footer
      %s24 = sadd.s32 1, %s20
    $region7: #{tpu_custom_call.1} parent=1 // loop_footer_branch
      %19 = sbr.rel target = $region3
    $region8: #{tpu_custom_call.1} parent=1 // loop_exit
      _
    %1321 = vsyncpa [#allocation5], 1
    %s1322 = scalar_lea.sflag [#allocation5], 1
    %1323 = vsyncpa %s1322, 1
    %1324 = vsyncpa [#allocation7], 1
    %s1325 = scalar_lea.sflag [#allocation7], 1
    %1326 = vsyncpa %s1325, 1

</llo_original>
